<compile_context>
chip_gen: v5e
topology: v5e:2x2
jax: 0.10.0
libtpu: 0.0.40
codegen_flags: <defaults>
</compile_context>

<pallas_src>
import functools

import jax
import jax.numpy as jnp
from jax.experimental import pallas as pl
from jax.experimental.pallas import tpu as pltpu

BIT_WIDTH = 4
SCALE = float(2 ** BIT_WIDTH - 1)   # 15
EPS = 1e-8
LANE = 128


def _round_up(a, b):
    return (a + b - 1) // b * b


@functools.lru_cache(maxsize=None)
def _tpu_flavor():
    """Generation-aware choices: (use_int8_mxu, vmem_limit_bytes)."""
    try:
        kind = jax.devices()[0].device_kind.lower()
    except Exception:       # pragma: no cover - CPU/interpret fallback
        kind = ""
    # v5e/v5p/v6e have a native int8 MXU; v7x does not (bf16 path there,
    # which is exact for codes in [0, 15]).
    int_mxu = ("v5" in kind) or ("v6" in kind)
    if ("v4" in kind) or ("v5" in kind) or ("v6" in kind):
        vmem_limit = 64 * 1024 * 1024       # 128 MiB physical VMEM
    else:
        vmem_limit = 32 * 1024 * 1024       # v7x: 64 MiB physical; stay safe
    return int_mxu, vmem_limit


# ----------------------------------------------------------------------------
# Kernel 1a: per-tile min / max of |x|  (fully parallel, VPU + one sublane
#            reduce per tile; the log of the two global scalars happens once
#            outside -- removes ~1 transcendental per element vs the old pass)
# ----------------------------------------------------------------------------
def _absrange_kernel(x_ref, mn_ref, mx_ref):
    a = jnp.abs(x_ref[...])
    mn = jnp.min(a, axis=0, keepdims=True)            # (1, LANE)
    mx = jnp.max(a, axis=0, keepdims=True)
    mn_ref[...] = jnp.broadcast_to(mn, mn_ref.shape)   # lane-dense (8, LANE) store
    mx_ref[...] = jnp.broadcast_to(mx, mx_ref.shape)


# ----------------------------------------------------------------------------
# Kernel 1b: elementwise LUQ quantize -> int8 codes in [0, 15] + int8 sign
# ----------------------------------------------------------------------------
def _quantize_kernel(mul_ref, lmin_ref, x_ref, q_ref, sign_ref):
    x = x_ref[...]
    logt = jnp.log(jnp.abs(x) + EPS)
    # (logt - lmin) * (SCALE / (lmax - lmin)): divide hoisted to a scalar.
    code = jnp.round((logt - lmin_ref[0, 0]) * mul_ref[0, 0])
    q_ref[...] = code.astype(jnp.int8)
    sign_ref[...] = jnp.sign(x).astype(jnp.int8)


def luq_quantize(x):
    """LUQ quantizer. Returns (q_int8, log_min, log_max, sign_int8);
    q / sign are shaped like x, log_min / log_max are f32 scalars."""
    _, vmem_limit = _tpu_flavor()
    orig_shape = x.shape
    flat = x.reshape(-1).astype(jnp.float32)
    n = flat.shape[0]
    rows = -(-n // LANE)
    tr = min(512, _round_up(rows, 32))      # 32-aligned for int8-native tiling
    rows_pad = _round_up(rows, tr)
    # edge-pad so padding never perturbs the global min / max of |x|
    flat_p = jnp.pad(flat, (0, rows_pad * LANE - n), mode="edge")
    x2d = flat_p.reshape(rows_pad, LANE)
    n_tiles = rows_pad // tr
    grid = (n_tiles,)

    # --- pass A: per-tile |x| min / max partials ("parallel" grid) ---
    mins, maxs = pl.pallas_call(
        _absrange_kernel,
        grid=grid,
        in_specs=[pl.BlockSpec((tr, LANE), lambda i: (i, 0))],
        out_specs=(
            pl.BlockSpec((8, LANE), lambda i: (i, 0)),
            pl.BlockSpec((8, LANE), lambda i: (i, 0)),
        ),
        out_shape=(
            jax.ShapeDtypeStruct((n_tiles * 8, LANE), jnp.float32),
            jax.ShapeDtypeStruct((n_tiles * 8, LANE), jnp.float32),
        ),
        compiler_params=pltpu.CompilerParams(
            dimension_semantics=("parallel",),
            vmem_limit_bytes=vmem_limit,
        ),
    )(x2d)

    # tiny final reduce + the only two logs of the whole pass
    lmin = jnp.log(jnp.min(mins) + EPS)
    lmax = jnp.log(jnp.max(maxs) + EPS)
    # Guard the degenerate constant-tensor case (reference would produce NaN);
    # for any non-constant input this is exactly the reference formula.
    denom = jnp.where(lmax > lmin, lmax - lmin, jnp.float32(1.0))
    mul = jnp.reshape(SCALE / denom, (1, 1)).astype(jnp.float32)
    lmin_arr = jnp.reshape(lmin, (1, 1)).astype(jnp.float32)

    # --- pass B: elementwise quantize (int8 codes + int8 sign out) ---
    q2d, s2d = pl.pallas_call(
        _quantize_kernel,
        grid=grid,
        in_specs=[
            pl.BlockSpec(memory_space=pltpu.MemorySpace.SMEM),   # mul
            pl.BlockSpec(memory_space=pltpu.MemorySpace.SMEM),   # lmin
            pl.BlockSpec((tr, LANE), lambda i: (i, 0)),          # x tile
        ],
        out_specs=(
            pl.BlockSpec((tr, LANE), lambda i: (i, 0)),
            pl.BlockSpec((tr, LANE), lambda i: (i, 0)),
        ),
        out_shape=(
            jax.ShapeDtypeStruct((rows_pad, LANE), jnp.int8),
            jax.ShapeDtypeStruct((rows_pad, LANE), jnp.int8),
        ),
        compiler_params=pltpu.CompilerParams(
            dimension_semantics=("parallel",),
            vmem_limit_bytes=vmem_limit,
        ),
    )(mul, lmin_arr, x2d)

    q = q2d.reshape(-1)[:n].reshape(orig_shape)
    sign = s2d.reshape(-1)[:n].reshape(orig_shape)
    return q, lmin, lmax, sign


# ----------------------------------------------------------------------------
# Kernel 2: tiled conv-as-matmul on int8 codes, fused LUQ dequantize epilogue
# ----------------------------------------------------------------------------
def _make_conv_dequant_kernel(op_dtype, acc_dtype):
    def kernel(scale_ref, lmin_ref, p_ref, w_ref, sign_ref, out_ref, acc_ref):
        k = pl.program_id(2)

        @pl.when(k == 0)
        def _():
            acc_ref[...] = jnp.zeros_like(acc_ref)

        # Codes are 0..15 so both the int8->int32 path (v5e/v6e native int MXU)
        # and the bf16->f32 path (v7x, no int MXU) are exact.
        acc_ref[...] += jnp.dot(p_ref[...].astype(op_dtype),
                                w_ref[...].astype(op_dtype),
                                preferred_element_type=acc_dtype)

        # Dequantize epilogue runs once per output tile, after the K reduction.
        @pl.when(k == pl.num_programs(2) - 1)
        def _():
            logt = (acc_ref[...].astype(jnp.float32) * scale_ref[0, 0]
                    + lmin_ref[0, 0])
            out_ref[...] = sign_ref[...].astype(jnp.float32) * jnp.exp(logt)

    return kernel


def _luq_conv2d_impl(x, weight_q, w_log_min, w_log_max, w_sign_scalar,
                     stride=1, padding=1):
    # layout: x is NCHW float32, weight_q is (O, C, kh, kw) int8 LUQ codes
    int_mxu, vmem_limit = _tpu_flavor()
    op_dtype = jnp.int8 if int_mxu else jnp.bfloat16
    acc_dtype = jnp.int32 if int_mxu else jnp.float32

    N, C, H, W = x.shape
    O, Cw, KH, KW = weight_q.shape
    assert C == Cw

    # --- quantize the activations (Pallas kernels 1a/1b) ---
    q_x, lmin_x, lmax_x, sign_x = luq_quantize(x)

    Ho = (H + 2 * padding - KH) // stride + 1
    Wo = (W + 2 * padding - KW) // stride + 1

    # --- im2col on the int8 codes (plain-JAX slicing glue) ---
    # TODO(synk): fully fusing im2col into kernel 2 (manual-DMA shifted windows
    # over the padded q_x codes) would remove this HBM intermediate entirely.
    xp = jnp.pad(q_x, ((0, 0), (0, 0), (padding, padding), (padding, padding)))
    cols = []
    for c in range(Cw):            # feature ordering (C, kh, kw) to match
        for i in range(KH):        # weight.reshape(O, C*kh*kw)
            for j in range(KW):
                cols.append(xp[:, c, i:i + Ho * stride:stride,
                                     j:j + Wo * stride:stride])
    patches = jnp.stack(cols, axis=-1).reshape(N * Ho * Wo, Cw * KH * KW)  # int8
    w_mat = weight_q.reshape(O, Cw * KH * KW).T                            # int8 (K, O)

    # TODO(synk): self.conv.sign in the reference has the weight's shape
    # (O, C, kh, kw), which cannot broadcast against sign_x / the conv output;
    # collapsed to a scalar.  The sign_x layout below requires O == C and
    # Ho == H, Wo == W -- exactly the conditions under which the reference
    # broadcasting is even defined.
    assert O == C and Ho == H and Wo == W
    sign_tot = (w_sign_scalar * sign_x.astype(jnp.float32)).transpose(0, 2, 3, 1)
    sign_tot = sign_tot.reshape(N * Ho * Wo, C).astype(jnp.int8)

    M = N * Ho * Wo
    K = Cw * KH * KW

    # --- tiling: TN spans the whole lane-padded O (patches streamed once),
    #     TK = full K when it fits (no K padding), TM up to 1024. ---
    O_lane = _round_up(O, LANE)
    if O_lane <= 512:
        TN, O_pad = O_lane, O_lane
    else:
        TN = 256
        O_pad = _round_up(O, TN)
    if K <= 1024:
        TK, K_pad = K, K                 # full-extent K block: no K padding
    else:
        TK = 512
        K_pad = _round_up(K, TK)
    TM = min(1024, _round_up(M, 8))
    M_pad = _round_up(M, TM)

    if M_pad == M and K_pad == K:
        patches_p = patches
    else:
        patches_p = jnp.pad(patches, ((0, M_pad - M), (0, K_pad - K)))
    w_mat_p = jnp.pad(w_mat, ((0, K_pad - K), (0, O_pad - O)))
    if M_pad == M and O_pad == O:
        sign_p = sign_tot
    else:
        sign_p = jnp.pad(sign_tot, ((0, M_pad - M), (0, O_pad - O)))

    lmin_tot = w_log_min + lmin_x
    lmax_tot = w_log_max + lmax_x
    scale_tot = jnp.reshape((lmax_tot - lmin_tot) / SCALE, (1, 1)).astype(jnp.float32)
    lmin_arr = jnp.reshape(lmin_tot, (1, 1)).astype(jnp.float32)

    grid = (M_pad // TM, O_pad // TN, K_pad // TK)

    out_flat = pl.pallas_call(
        _make_conv_dequant_kernel(op_dtype, acc_dtype),
        grid=grid,
        in_specs=[
            pl.BlockSpec(memory_space=pltpu.MemorySpace.SMEM),        # scale_tot
            pl.BlockSpec(memory_space=pltpu.MemorySpace.SMEM),        # lmin_tot
            pl.BlockSpec((TM, TK), lambda i, j, k: (i, k)),           # patches
            pl.BlockSpec((TK, TN), lambda i, j, k: (k, j)),           # weights
            pl.BlockSpec((TM, TN), lambda i, j, k: (i, j)),           # sign
        ],
        out_specs=pl.BlockSpec((TM, TN), lambda i, j, k: (i, j)),
        out_shape=jax.ShapeDtypeStruct((M_pad, O_pad), jnp.float32),
        scratch_shapes=[pltpu.VMEM((TM, TN), acc_dtype)],
        compiler_params=pltpu.CompilerParams(
            dimension_semantics=("parallel", "parallel", "arbitrary"),
            vmem_limit_bytes=vmem_limit,
        ),
    )(scale_tot, lmin_arr, patches_p, w_mat_p, sign_p)

    # strip padding, back to NCHW
    # TODO(synk): a consumer that accepts NHWC could skip this transpose.
    out = out_flat[:M, :O].reshape(N, Ho, Wo, O).transpose(0, 3, 1, 2)
    return out


luq_conv2d = jax.jit(_luq_conv2d_impl, static_argnames=("stride", "padding"))


if __name__ == "__main__":
    key = jax.random.PRNGKey(0)
    kx, kw = jax.random.split(key)

    N, C, H, W = 2, 4, 16, 16
    O, KH, KW = 4, 3, 3          # out_channels == in_channels (required for
                                 # the reference sign broadcasting to be valid)

    x = jax.random.normal(kx, (N, C, H, W), dtype=jnp.float32)
    weight = jax.random.normal(kw, (O, C, KH, KW), dtype=jnp.float32) * 0.1

    # Post-training LUQ of the conv weight: the reference forward() reads
    # self.conv.log_min / log_max / sign and convolves with the (already
    # quantized) conv.weight, so we reproduce that setup with the same
    # quantizer.
    w_q, w_log_min, w_log_max, _w_sign = luq_quantize(weight)
    # TODO(synk): self.conv.sign has the weight's shape in the reference and
    # cannot broadcast against sign_x / the conv output; collapsed to +1.
    w_sign_scalar = jnp.float32(1.0)

    out = luq_conv2d(x, w_q, w_log_min, w_log_max, w_sign_scalar,
                     stride=1, padding=1)
    jax.block_until_ready(out)
    assert out.shape == (N, O, H, W)
    print("KERNEL_OK")
</pallas_src>

<mosaic_0001>
module attributes {stable_mosaic.version = 11 : i64} {
  func.func @_absrange_kernel(%arg0: i32, %arg1: memref<32x128xf32, #tpu.memory_space<vmem>>, %arg2: memref<8x128xf32, #tpu.memory_space<vmem>>, %arg3: memref<8x128xf32, #tpu.memory_space<vmem>>) attributes {dimension_semantics = [#tpu.dimension_semantics<parallel>], iteration_bounds = array<i64: 1>, scalar_prefetch = 0 : i64, scratch_operands = 0 : i64, tpu.core_type = #tpu.core_type<tc>, window_params = [{transform_indices = @transform_0, window_bounds = array<i64: 32, 128>}, {transform_indices = @transform_1, window_bounds = array<i64: 8, 128>}, {transform_indices = @transform_2, window_bounds = array<i64: 8, 128>}]} {
    %c0 = arith.constant 0 : index
    %c0_0 = arith.constant 0 : index
    %0 = vector.load %arg1[%c0, %c0_0] : memref<32x128xf32, #tpu.memory_space<vmem>>, vector<32x128xf32>
    %1 = math.absf %0 : vector<32x128xf32>
    %cst = arith.constant dense<0x7F800000> : vector<128xf32>
    %2 = vector.multi_reduction <minimumf>, %1, %cst [0] : vector<32x128xf32> to vector<128xf32>
    %3 = vector.shape_cast %2 : vector<128xf32> to vector<1x128xf32>
    %cst_1 = arith.constant dense<0xFF800000> : vector<128xf32>
    %4 = vector.multi_reduction <maximumf>, %1, %cst_1 [0] : vector<32x128xf32> to vector<128xf32>
    %5 = vector.shape_cast %4 : vector<128xf32> to vector<1x128xf32>
    %6 = vector.shape_cast %3 : vector<1x128xf32> to vector<1x128xf32>
    %7 = vector.broadcast %6 : vector<1x128xf32> to vector<8x128xf32>
    %c0_2 = arith.constant 0 : index
    %c0_3 = arith.constant 0 : index
    %8 = vector.load %arg2[%c0_2, %c0_3] : memref<8x128xf32, #tpu.memory_space<vmem>>, vector<8x128xf32>
    tpu.vector_store %arg2[%c0_2, %c0_3], %7 {strides = array<i32>} : memref<8x128xf32, #tpu.memory_space<vmem>>, vector<8x128xf32>,
    %9 = vector.shape_cast %5 : vector<1x128xf32> to vector<1x128xf32>
    %10 = vector.broadcast %9 : vector<1x128xf32> to vector<8x128xf32>
    %c0_4 = arith.constant 0 : index
    %c0_5 = arith.constant 0 : index
    %11 = vector.load %arg3[%c0_4, %c0_5] : memref<8x128xf32, #tpu.memory_space<vmem>>, vector<8x128xf32>
    tpu.vector_store %arg3[%c0_4, %c0_5], %10 {strides = array<i32>} : memref<8x128xf32, #tpu.memory_space<vmem>>, vector<8x128xf32>,
    return
  }
  func.func @transform_0(%arg0: i32) -> (i32, i32) {
    %c0_i32 = arith.constant 0 : i32
    %c0_i32_0 = arith.constant 0 : i32
    return %arg0, %c0_i32 : i32, i32
  }
  func.func @transform_1(%arg0: i32) -> (i32, i32) {
    %c0_i32 = arith.constant 0 : i32
    %c0_i32_0 = arith.constant 0 : i32
    return %arg0, %c0_i32 : i32, i32
  }
  func.func @transform_2(%arg0: i32) -> (i32, i32) {
    %c0_i32 = arith.constant 0 : i32
    %c0_i32_0 = arith.constant 0 : i32
    return %arg0, %c0_i32 : i32, i32
  }
}

</mosaic_0001>

<llo_original>
// kernel: tpu_custom_call.1
$region0: #{tpu_custom_call.1}
  #allocation0 [shape = 'u32[]', space=smem, size = 0x4, offset = 0x4, fixed_abs, tag = 'smem constant byte address 0x4 - core index']
  #allocation1 [shape = 'u32[72,128]{1,0:T(1,128)}', space=vmem, size = 0x9000, scoped, tag = 'internal scratch']
  %s0 = inlined_call_operand.hbm [shape: f32[32,128], index: 0, kind: input, shape index: {}]
  %s1 = inlined_call_operand.hbm [shape: f32[8,128], index: 1, kind: output, shape index: {0}]
  %s2 = inlined_call_operand.hbm [shape: f32[8,128], index: 2, kind: output, shape index: {1}]
  %3 = xla_tuple %s1, %s2
  %s4 = sld [smem:[#allocation0]]
  $region26: #{tpu_custom_call.1} parent=0
    _
  %s6 = ssub.s32 1, %s4
  %s7 = scalar_select 0, %s6, %s4
  $region1: #{tpu_custom_call.1} parent=0
    #allocation2 [shape = 'u8[16384]{0}', space=vmem, size = 0x4000, scoped, tag = 'input window, operand 0, single buffered']
    #allocation3 [shape = 's32[1]{0}', space=sflag, size = 0x4, scoped, tag = 'scoped memory for tpu_custom_call.1']
    #allocation4 [shape = 's32[1]{0}', space=sflag, size = 0x4, scoped, tag = 'scoped memory for tpu_custom_call.1']
    #allocation5 [shape = 'u8[4096]{0}', space=vmem, size = 0x1000, scoped, tag = 'output window, operand 0, single buffered']
    #allocation6 [shape = 'u8[4096]{0}', space=vmem, size = 0x1000, scoped, tag = 'output window, operand 1, single buffered']
    #allocation7 [shape = 's32[1]{0}', space=sflag, size = 0x4, scoped, tag = 'scoped memory for tpu_custom_call.1']
    %8 = vsyncpa [#allocation3], 0
    %9 = vsyncpa [#allocation4], 0
    %10 = vsyncpa [#allocation7], 0
    // Predicated region
    $region2: #{tpu_custom_call.1} parent=1 // pred_check
      _
    $region3: #{tpu_custom_call.1} parent=1 // pred_check_branch
      %12 = sbr.rel (0) target = $region5
    $region4: #{tpu_custom_call.1} parent=1 // pred_region
      %14 = vsyncadd [#allocation3], 0
      %s15 = sshll.u32 %s0, 4
      %s16 = int_to_ptr.hbm [resolvable:$true] %s15
      %s17 = sshll.u32 [#allocation2], 4
      %s18 = int_to_ptr.vmem [resolvable:$true] %s17
      %23 = dma.hbm_to_vmem [thread:$0]  %s16, 512, %s18, [#allocation3], 128, 128, 8
    $region5: #{tpu_custom_call.1} parent=1 // pred_fallthru
      _
    // Predicated region
    $region6: #{tpu_custom_call.1} parent=1 // pred_check
      _
    $region7: #{tpu_custom_call.1} parent=1 // pred_check_branch
      %25 = sbr.rel (0) target = $region9
    $region8: #{tpu_custom_call.1} parent=1 // pred_region
      %27 = dma.done [#allocation3], 512
    $region9: #{tpu_custom_call.1} parent=1 // pred_fallthru
      _
    %v28 = vld [vmem:[#allocation2] sm:$0xff]
    %v29 = vld [vmem:[#allocation2 + $0x8] sm:$0xff]
    %v30 = vld [vmem:[#allocation2 + $0x10] sm:$0xff]
    %v31 = vld [vmem:[#allocation2 + $0x18] sm:$0xff]
    %v32 = vand.u32 2147483647, %v28
    %v33 = vand.u32 2147483647, %v29
    %v34 = vand.u32 2147483647, %v30
    %v35 = vand.u32 2147483647, %v31
    %v36 = vmin.f32 %v32, %v33
    %v37 = vmin.f32 %v34, %v35
    %v38 = vmin.f32 %v36, %v37
    %v39 = vrot.slane %v38, 4
    %v40 = vmin.f32 %v38, %v39
    %v41 = vrot.slane %v40, 2
    %v42 = vmin.f32 %v40, %v41
    %v43 = vrot.slane %v42, 1
    %v44 = vmin.f32 %v42, %v43
    %v45 = vmax.f32 %v32, %v33
    %v46 = vmax.f32 %v34, %v35
    %v47 = vmax.f32 %v45, %v46
    %v48 = vrot.slane %v47, 4
    %v49 = vmax.f32 %v47, %v48
    %v50 = vrot.slane %v49, 2
    %v51 = vmax.f32 %v49, %v50
    %v52 = vrot.slane %v51, 1
    %v53 = vmax.f32 %v51, %v52
    %54 = vst [vmem:[#allocation5] sm:$0xff] %v44
    %55 = vst [vmem:[#allocation6] sm:$0xff] %v53
    // Predicated region
    $region10: #{tpu_custom_call.1} parent=1 // pred_check
      _
    $region11: #{tpu_custom_call.1} parent=1 // pred_check_branch
      %57 = sbr.rel (0) target = $region13
    $region12: #{tpu_custom_call.1} parent=1 // pred_region
      %59 = vsyncadd [#allocation4], 0
      %s61 = sshll.u32 [#allocation5], 4
      %s62 = int_to_ptr.vmem [resolvable:$true] %s61
      %s63 = sshll.u32 %s1, 4
      %s64 = int_to_ptr.hbm [resolvable:$true] %s63
      %66 = dma.vmem_to_hbm [thread:$0]  %s62, 128, %s64, [#allocation4]
    $region13: #{tpu_custom_call.1} parent=1 // pred_fallthru
      _
    // Predicated region
    $region14: #{tpu_custom_call.1} parent=1 // pred_check
      _
    $region15: #{tpu_custom_call.1} parent=1 // pred_check_branch
      %68 = sbr.rel (0) target = $region17
    $region16: #{tpu_custom_call.1} parent=1 // pred_region
      %70 = vsyncadd [#allocation7], 0
      %s72 = sshll.u32 [#allocation6], 4
      %s73 = int_to_ptr.vmem [resolvable:$true] %s72
      %s74 = sshll.u32 %s2, 4
      %s75 = int_to_ptr.hbm [resolvable:$true] %s74
      %77 = dma.vmem_to_hbm [thread:$0]  %s73, 128, %s75, [#allocation7]
    $region17: #{tpu_custom_call.1} parent=1 // pred_fallthru
      _
    // Predicated region
    $region18: #{tpu_custom_call.1} parent=1 // pred_check
      _
    $region19: #{tpu_custom_call.1} parent=1 // pred_check_branch
      %79 = sbr.rel (0) target = $region21
    $region20: #{tpu_custom_call.1} parent=1 // pred_region
      %81 = dma.done [#allocation4], 128
    $region21: #{tpu_custom_call.1} parent=1 // pred_fallthru
      _
    // Predicated region
    $region22: #{tpu_custom_call.1} parent=1 // pred_check
      _
    $region23: #{tpu_custom_call.1} parent=1 // pred_check_branch
      %83 = sbr.rel (0) target = $region25
    $region24: #{tpu_custom_call.1} parent=1 // pred_region
      %85 = dma.done [#allocation7], 128
    $region25: #{tpu_custom_call.1} parent=1 // pred_fallthru
      _
    %86 = vsyncpa [#allocation3], 1
    %87 = vsyncpa [#allocation4], 1
    %88 = vsyncpa [#allocation7], 1

</llo_original>
